<compile_context>
chip_gen: v7x
topology: tpu7x:2x2x1
jax: 0.10.0
libtpu: 0.0.40
codegen_flags: <defaults>
</compile_context>

<pallas_src>
import functools

import jax
import jax.numpy as jnp
from jax.experimental import pallas as pl
from jax.experimental.pallas import tpu as pltpu

_EPS = 1e-8
_LANE = 128
_ROW_ALIGN = 32                          # int8 mask native sublane tiling
_TARGET_BLOCK_BYTES = 4 * 1024 * 1024    # per (largest) input per grid step
_VMEM_LIMIT_BYTES = 40 * 1024 * 1024


def _cdiv(a, b):
    return (a + b - 1) // b


def _num_tensorcores():
    """Best-effort TensorCore count (2 on v7x, 1 on v5e/v6e). Defaults to 1."""
    try:
        info = pltpu.get_tpu_info()
        for attr in ("num_cores", "core_count", "num_tensorcores",
                     "tensorcore_count"):
            v = getattr(info, attr, None)
            if isinstance(v, int) and v > 0:
                return max(1, min(v, 2))
    except Exception:
        pass
    try:
        dev = jax.devices()[0]
        for attr in ("num_cores", "core_count"):
            v = getattr(dev, attr, None)
            if isinstance(v, int) and v > 0:
                return max(1, min(v, 2))
    except Exception:
        pass
    return 1


def _silog_partials_kernel(p_ref, t_ref, m_ref, d_ref, d2_ref, cnt_ref, *,
                           total_rows, block_rows, blocks_per_core, cols):
    """Accumulate per-core (1, cols) partials of [sum d, sum d^2, count]."""
    c = pl.program_id(0)          # core split ("parallel")
    k = pl.program_id(1)          # streaming step ("arbitrary" reduction axis)

    @pl.when(k == 0)
    def _init():
        d_ref[...] = jnp.zeros_like(d_ref)
        d2_ref[...] = jnp.zeros_like(d2_ref)
        cnt_ref[...] = jnp.zeros_like(cnt_ref)

    row0 = (c * blocks_per_core + k) * block_rows

    def _accumulate(valid):
        p = p_ref[...].astype(jnp.float32)
        t = t_ref[...].astype(jnp.float32)
        # NaN-proof masking: select, never multiply — garbage in partially
        # read edge blocks (NaN / negative) must not poison the sums.
        ld = jnp.where(valid, jnp.log(p + _EPS) - jnp.log(t + _EPS), 0.0)
        # Reductions are simple sublane folds; kernel stays HBM-bound even if
        # the compiler materializes the block-sized intermediates (VPU / vld /
        # vst headroom >> the HBM-limited element rate on v5e/v6e/v7x).
        d_ref[...] += jnp.sum(ld, axis=0, keepdims=True)
        d2_ref[...] += jnp.sum(ld * ld, axis=0, keepdims=True)
        cnt_ref[...] += jnp.sum(valid.astype(jnp.float32), axis=0, keepdims=True)

    is_interior = row0 + block_rows <= total_rows       # fully in-bounds block
    is_boundary = jnp.logical_and(row0 < total_rows,
                                  jnp.logical_not(is_interior))
    # Fully out-of-range (clamped duplicate) blocks fall through both branches:
    # their DMA'd garbage is never accumulated.

    @pl.when(is_interior)
    def _interior():              # fast path: no row-bounds mask at all
        _accumulate(m_ref[...] != 0)

    @pl.when(is_boundary)
    def _boundary():              # ragged last block: drop rows >= total_rows
        r = jax.lax.broadcasted_iota(jnp.int32, (block_rows, cols), 0)
        in_bounds = (row0 + r) < total_rows
        _accumulate(jnp.logical_and(m_ref[...] != 0, in_bounds))


def silog_loss(pred_depth, target_depth, valid_mask, lambda_weight=0.85):
    """SI-Log depth loss.  pred/target: [B,1,H,W] float, valid_mask: bool."""
    n = pred_depth.size
    if n == 0:
        return jnp.float32(0.0)

    # Zero-copy 2-D views (no jnp.pad / slice HBM passes).
    if n % _LANE == 0:
        rows, cols = n // _LANE, _LANE          # perfect lane-dense view
    else:
        cols = pred_depth.shape[-1]             # natural (B*C*H, W) collapse
        rows = n // cols

    p2d = jnp.reshape(pred_depth, (rows, cols))
    t2d = jnp.reshape(target_depth, (rows, cols))

    # Mask streamed as int8 (1 B/elem); the cheap convert is fusible into the
    # pallas call via allow_input_fusion.
    if valid_mask.dtype in (jnp.bool_, jnp.int8, jnp.uint8):
        m2d = jnp.reshape(valid_mask, (rows, cols)).astype(jnp.int8)
    else:  # defensive: float / wide-int masks -> "nonzero means valid"
        m2d = jnp.reshape(valid_mask != 0, (rows, cols)).astype(jnp.int8)

    # Big streaming blocks (~4 MiB per largest input per step), rows a
    # multiple of 32 unless one block covers the whole array.
    bytes_per_row = cols * max(p2d.dtype.itemsize, t2d.dtype.itemsize)
    block_rows = max(_TARGET_BLOCK_BYTES // bytes_per_row, _ROW_ALIGN)
    block_rows = (block_rows // _ROW_ALIGN) * _ROW_ALIGN
    if block_rows >= rows:
        block_rows = rows                        # single full-array block
    n_blocks = _cdiv(rows, block_rows)

    # Only split across TensorCores where there are 2 TCs (v7x); on 1-TC
    # chips a second split is pure overhead.
    n_splits = _num_tensorcores() if n_blocks > 1 else 1
    blocks_per_core = _cdiv(n_blocks, n_splits)

    def in_map(c, k):
        # Clamp so the DMA never names a block past the array; in-kernel
        # gating skips accumulation for clamped / overhanging rows.
        return (jnp.minimum(c * blocks_per_core + k, n_blocks - 1), 0)

    in_spec = pl.BlockSpec((block_rows, cols), in_map)
    out_spec = pl.BlockSpec((None, 1, cols), lambda c, k: (c, 0, 0))
    acc_shape = jax.ShapeDtypeStruct((n_splits, 1, cols), jnp.float32)

    kernel = functools.partial(
        _silog_partials_kernel,
        total_rows=rows,
        block_rows=block_rows,
        blocks_per_core=blocks_per_core,
        cols=cols,
    )

    bytes_accessed = n * (p2d.dtype.itemsize + t2d.dtype.itemsize + 1)
    cost = pl.CostEstimate(flops=10 * n, transcendentals=2 * n,
                           bytes_accessed=bytes_accessed)

    d_part, d2_part, cnt_part = pl.pallas_call(
        kernel,
        out_shape=(acc_shape, acc_shape, acc_shape),
        grid_spec=pltpu.PrefetchScalarGridSpec(
            num_scalar_prefetch=0,
            grid=(n_splits, blocks_per_core),
            in_specs=[in_spec, in_spec, in_spec],
            out_specs=[out_spec, out_spec, out_spec],
        ),
        compiler_params=pltpu.CompilerParams(
            dimension_semantics=("parallel", "arbitrary"),
            vmem_limit_bytes=_VMEM_LIMIT_BYTES,
            allow_input_fusion=[True, True, True],
        ),
        cost_estimate=cost,
    )(p2d, t2d, m2d)

    # Tiny scalar combine in plain JAX.
    sum_d = jnp.sum(d_part)
    sum_d2 = jnp.sum(d2_part)
    count = jnp.sum(cnt_part)
    safe_count = jnp.maximum(count, 1.0)
    mean_d = sum_d / safe_count
    mean_d2 = sum_d2 / safe_count
    # Clamp: fp rounding can push the variance term slightly negative.
    loss = jnp.sqrt(jnp.maximum(mean_d2 - lambda_weight * mean_d * mean_d, 0.0))
    # PyTorch semantics: no valid elements -> 0.0
    return jnp.where(count > 0.0, loss, jnp.float32(0.0))


if __name__ == "__main__":
    def _reference(pred, target, mask, lam):
        d = jnp.log(pred + _EPS) - jnp.log(target + _EPS)
        mf = mask.astype(jnp.float32)
        cnt = jnp.sum(mf)
        m1 = jnp.sum(d * mf) / cnt
        m2 = jnp.sum(d * d * mf) / cnt
        return jnp.sqrt(m2 - lam * m1 * m1)

    key = jax.random.PRNGKey(0)
    k1, k2, k3 = jax.random.split(key, 3)

    # Primary case: [B,1,H,W] as the module expects (n is 128-aligned).
    B, C, H, W = 2, 1, 16, 16
    pred = jax.random.uniform(k1, (B, C, H, W), jnp.float32, 0.1, 10.0)
    target = jax.random.uniform(k2, (B, C, H, W), jnp.float32, 0.1, 10.0)
    mask = jax.random.uniform(k3, (B, C, H, W), jnp.float32) > 0.3

    loss = jax.block_until_ready(silog_loss(pred, target, mask, 0.85))
    ref = _reference(pred, target, mask, 0.85)
    assert jnp.allclose(loss, ref, atol=1e-5, rtol=1e-5), (loss, ref)

    # Ragged case (n % 128 != 0): exercises the zero-copy (B*C*H, W) view.
    B2, C2, H2, W2 = 1, 1, 15, 20   # n = 300
    pred2 = jax.random.uniform(k1, (B2, C2, H2, W2), jnp.float32, 0.1, 10.0)
    target2 = jax.random.uniform(k2, (B2, C2, H2, W2), jnp.float32, 0.1, 10.0)
    mask2 = jax.random.uniform(k3, (B2, C2, H2, W2), jnp.float32) > 0.3

    loss2 = jax.block_until_ready(silog_loss(pred2, target2, mask2, 0.85))
    ref2 = _reference(pred2, target2, mask2, 0.85)
    assert jnp.allclose(loss2, ref2, atol=1e-5, rtol=1e-5), (loss2, ref2)

    print("KERNEL_OK")
</pallas_src>

<mosaic_0001>
module attributes {stable_mosaic.version = 11 : i64} {
  func.func @_silog_partials_kernel(%arg0: i32, %arg1: i32, %arg2: memref<4x128xf32, #tpu.memory_space<vmem>>, %arg3: memref<4x128xf32, #tpu.memory_space<vmem>>, %arg4: memref<4x128xi8, #tpu.memory_space<vmem>>, %arg5: memref<1x1x128xf32, #tpu.memory_space<vmem>>, %arg6: memref<1x1x128xf32, #tpu.memory_space<vmem>>, %arg7: memref<1x1x128xf32, #tpu.memory_space<vmem>>) attributes {dimension_semantics = [#tpu.dimension_semantics<parallel>, #tpu.dimension_semantics<arbitrary>], iteration_bounds = array<i64: 1, 1>, scalar_prefetch = 0 : i64, scratch_operands = 0 : i64, tpu.core_type = #tpu.core_type<tc>, window_params = [{transform_indices = @transform_0, window_bounds = array<i64: 4, 128>}, {transform_indices = @transform_1, window_bounds = array<i64: 4, 128>}, {transform_indices = @transform_2, window_bounds = array<i64: 4, 128>}, {transform_indices = @transform_3, window_bounds = array<i64: 1, 1, 128>}, {transform_indices = @transform_4, window_bounds = array<i64: 1, 1, 128>}, {transform_indices = @transform_5, window_bounds = array<i64: 1, 1, 128>}]} {
    %c0_i32 = arith.constant 0 : i32
    %0 = arith.cmpi eq, %arg1, %c0_i32 : i32
    %1 = arith.extui %0 : i1 to i32
    %c0_i32_0 = arith.constant 0 : i32
    %2 = arith.cmpi ne, %1, %c0_i32_0 : i32
    scf.if %2 {
      %cst = arith.constant 0.000000e+00 : f32
      %15 = vector.broadcast %cst : f32 to vector<1x128xf32>
      %c0 = arith.constant 0 : index
      %c0_6 = arith.constant 0 : index
      %c0_7 = arith.constant 0 : index
      %16 = vector.load %arg5[%c0, %c0_6, %c0_7] : memref<1x1x128xf32, #tpu.memory_space<vmem>>, vector<1x1x128xf32>
      %17 = vector.shape_cast %16 : vector<1x1x128xf32> to vector<1x128xf32>
      %18 = vector.shape_cast %15 : vector<1x128xf32> to vector<1x1x128xf32>
      tpu.vector_store %arg5[%c0, %c0_6, %c0_7], %18 {strides = array<i32>} : memref<1x1x128xf32, #tpu.memory_space<vmem>>, vector<1x1x128xf32>,
      %cst_8 = arith.constant 0.000000e+00 : f32
      %19 = vector.broadcast %cst_8 : f32 to vector<1x128xf32>
      %c0_9 = arith.constant 0 : index
      %c0_10 = arith.constant 0 : index
      %c0_11 = arith.constant 0 : index
      %20 = vector.load %arg6[%c0_9, %c0_10, %c0_11] : memref<1x1x128xf32, #tpu.memory_space<vmem>>, vector<1x1x128xf32>
      %21 = vector.shape_cast %20 : vector<1x1x128xf32> to vector<1x128xf32>
      %22 = vector.shape_cast %19 : vector<1x128xf32> to vector<1x1x128xf32>
      tpu.vector_store %arg6[%c0_9, %c0_10, %c0_11], %22 {strides = array<i32>} : memref<1x1x128xf32, #tpu.memory_space<vmem>>, vector<1x1x128xf32>,
      %cst_12 = arith.constant 0.000000e+00 : f32
      %23 = vector.broadcast %cst_12 : f32 to vector<1x128xf32>
      %c0_13 = arith.constant 0 : index
      %c0_14 = arith.constant 0 : index
      %c0_15 = arith.constant 0 : index
      %24 = vector.load %arg7[%c0_13, %c0_14, %c0_15] : memref<1x1x128xf32, #tpu.memory_space<vmem>>, vector<1x1x128xf32>
      %25 = vector.shape_cast %24 : vector<1x1x128xf32> to vector<1x128xf32>
      %26 = vector.shape_cast %23 : vector<1x128xf32> to vector<1x1x128xf32>
      tpu.vector_store %arg7[%c0_13, %c0_14, %c0_15], %26 {strides = array<i32>} : memref<1x1x128xf32, #tpu.memory_space<vmem>>, vector<1x1x128xf32>,
    } else {
    }
    %c1_i32 = arith.constant 1 : i32
    %3 = arith.muli %arg0, %c1_i32 : i32
    %4 = arith.addi %3, %arg1 : i32
    %c4_i32 = arith.constant 4 : i32
    %5 = arith.muli %4, %c4_i32 : i32
    %c4_i32_1 = arith.constant 4 : i32
    %6 = arith.addi %5, %c4_i32_1 : i32
    %c4_i32_2 = arith.constant 4 : i32
    %7 = arith.cmpi sle, %6, %c4_i32_2 : i32
    %c4_i32_3 = arith.constant 4 : i32
    %8 = arith.cmpi slt, %5, %c4_i32_3 : i32
    %true = arith.constant true
    %9 = arith.xori %7, %true : i1
    %10 = arith.andi %8, %9 : i1
    %11 = arith.extui %7 : i1 to i32
    %c0_i32_4 = arith.constant 0 : i32
    %12 = arith.cmpi ne, %11, %c0_i32_4 : i32
    scf.if %12 {
      %c0 = arith.constant 0 : index
      %c0_6 = arith.constant 0 : index
      %15 = vector.load %arg4[%c0, %c0_6] : memref<4x128xi8, #tpu.memory_space<vmem>>, vector<4x128xi8>
      %c0_i8 = arith.constant 0 : i8
      %16 = vector.broadcast %c0_i8 : i8 to vector<4x128xi8>
      %17 = arith.cmpi ne, %15, %16 : vector<4x128xi8>
      %c0_7 = arith.constant 0 : index
      %c0_8 = arith.constant 0 : index
      %18 = vector.load %arg2[%c0_7, %c0_8] : memref<4x128xf32, #tpu.memory_space<vmem>>, vector<4x128xf32>
      %c0_9 = arith.constant 0 : index
      %c0_10 = arith.constant 0 : index
      %19 = vector.load %arg3[%c0_9, %c0_10] : memref<4x128xf32, #tpu.memory_space<vmem>>, vector<4x128xf32>
      %cst = arith.constant 9.99999993E-9 : f32
      %20 = vector.broadcast %cst : f32 to vector<4x128xf32>
      %21 = arith.addf %18, %20 : vector<4x128xf32>
      %22 = math.log %21 : vector<4x128xf32>
      %cst_11 = arith.constant 9.99999993E-9 : f32
      %23 = vector.broadcast %cst_11 : f32 to vector<4x128xf32>
      %24 = arith.addf %19, %23 : vector<4x128xf32>
      %25 = math.log %24 : vector<4x128xf32>
      %26 = arith.subf %22, %25 : vector<4x128xf32>
      %cst_12 = arith.constant 0.000000e+00 : f32
      %27 = vector.broadcast %cst_12 : f32 to vector<4x128xf32>
      %28 = arith.select %17, %26, %27 : vector<4x128xi1>, vector<4x128xf32>
      %c0_13 = arith.constant 0 : index
      %c0_14 = arith.constant 0 : index
      %c0_15 = arith.constant 0 : index
      %29 = vector.load %arg5[%c0_13, %c0_14, %c0_15] : memref<1x1x128xf32, #tpu.memory_space<vmem>>, vector<1x1x128xf32>
      %30 = vector.shape_cast %29 : vector<1x1x128xf32> to vector<1x128xf32>
      %cst_16 = arith.constant dense<0.000000e+00> : vector<128xf32>
      %31 = vector.multi_reduction <add>, %28, %cst_16 [0] : vector<4x128xf32> to vector<128xf32>
      %32 = vector.shape_cast %31 : vector<128xf32> to vector<1x128xf32>
      %33 = arith.addf %30, %32 : vector<1x128xf32>
      %c0_17 = arith.constant 0 : index
      %c0_18 = arith.constant 0 : index
      %c0_19 = arith.constant 0 : index
      %34 = vector.load %arg5[%c0_17, %c0_18, %c0_19] : memref<1x1x128xf32, #tpu.memory_space<vmem>>, vector<1x1x128xf32>
      %35 = vector.shape_cast %34 : vector<1x1x128xf32> to vector<1x128xf32>
      %36 = vector.shape_cast %33 : vector<1x128xf32> to vector<1x1x128xf32>
      tpu.vector_store %arg5[%c0_17, %c0_18, %c0_19], %36 {strides = array<i32>} : memref<1x1x128xf32, #tpu.memory_space<vmem>>, vector<1x1x128xf32>,
      %c0_20 = arith.constant 0 : index
      %c0_21 = arith.constant 0 : index
      %c0_22 = arith.constant 0 : index
      %37 = vector.load %arg6[%c0_20, %c0_21, %c0_22] : memref<1x1x128xf32, #tpu.memory_space<vmem>>, vector<1x1x128xf32>
      %38 = vector.shape_cast %37 : vector<1x1x128xf32> to vector<1x128xf32>
      %39 = arith.mulf %28, %28 : vector<4x128xf32>
      %cst_23 = arith.constant dense<0.000000e+00> : vector<128xf32>
      %40 = vector.multi_reduction <add>, %39, %cst_23 [0] : vector<4x128xf32> to vector<128xf32>
      %41 = vector.shape_cast %40 : vector<128xf32> to vector<1x128xf32>
      %42 = arith.addf %38, %41 : vector<1x128xf32>
      %c0_24 = arith.constant 0 : index
      %c0_25 = arith.constant 0 : index
      %c0_26 = arith.constant 0 : index
      %43 = vector.load %arg6[%c0_24, %c0_25, %c0_26] : memref<1x1x128xf32, #tpu.memory_space<vmem>>, vector<1x1x128xf32>
      %44 = vector.shape_cast %43 : vector<1x1x128xf32> to vector<1x128xf32>
      %45 = vector.shape_cast %42 : vector<1x128xf32> to vector<1x1x128xf32>
      tpu.vector_store %arg6[%c0_24, %c0_25, %c0_26], %45 {strides = array<i32>} : memref<1x1x128xf32, #tpu.memory_space<vmem>>, vector<1x1x128xf32>,
      %c0_27 = arith.constant 0 : index
      %c0_28 = arith.constant 0 : index
      %c0_29 = arith.constant 0 : index
      %46 = vector.load %arg7[%c0_27, %c0_28, %c0_29] : memref<1x1x128xf32, #tpu.memory_space<vmem>>, vector<1x1x128xf32>
      %47 = vector.shape_cast %46 : vector<1x1x128xf32> to vector<1x128xf32>
      %48 = arith.extui %17 : vector<4x128xi1> to vector<4x128xi32>
      %49 = arith.sitofp %48 : vector<4x128xi32> to vector<4x128xf32>
      %cst_30 = arith.constant dense<0.000000e+00> : vector<128xf32>
      %50 = vector.multi_reduction <add>, %49, %cst_30 [0] : vector<4x128xf32> to vector<128xf32>
      %51 = vector.shape_cast %50 : vector<128xf32> to vector<1x128xf32>
      %52 = arith.addf %47, %51 : vector<1x128xf32>
      %c0_31 = arith.constant 0 : index
      %c0_32 = arith.constant 0 : index
      %c0_33 = arith.constant 0 : index
      %53 = vector.load %arg7[%c0_31, %c0_32, %c0_33] : memref<1x1x128xf32, #tpu.memory_space<vmem>>, vector<1x1x128xf32>
      %54 = vector.shape_cast %53 : vector<1x1x128xf32> to vector<1x128xf32>
      %55 = vector.shape_cast %52 : vector<1x128xf32> to vector<1x1x128xf32>
      tpu.vector_store %arg7[%c0_31, %c0_32, %c0_33], %55 {strides = array<i32>} : memref<1x1x128xf32, #tpu.memory_space<vmem>>, vector<1x1x128xf32>,
    } else {
    }
    %13 = arith.extui %10 : i1 to i32
    %c0_i32_5 = arith.constant 0 : i32
    %14 = arith.cmpi ne, %13, %c0_i32_5 : i32
    scf.if %14 {
      %15 = tpu.iota {dimensions = array<i32: 0>} : vector<4x128xi32>
      %16 = vector.broadcast %5 : i32 to vector<4x128xi32>
      %17 = arith.addi %16, %15 : vector<4x128xi32>
      %c4_i32_6 = arith.constant 4 : i32
      %18 = vector.broadcast %c4_i32_6 : i32 to vector<4x128xi32>
      %19 = arith.cmpi slt, %17, %18 : vector<4x128xi32>
      %c0 = arith.constant 0 : index
      %c0_7 = arith.constant 0 : index
      %20 = vector.load %arg4[%c0, %c0_7] : memref<4x128xi8, #tpu.memory_space<vmem>>, vector<4x128xi8>
      %c0_i8 = arith.constant 0 : i8
      %21 = vector.broadcast %c0_i8 : i8 to vector<4x128xi8>
      %22 = arith.cmpi ne, %20, %21 : vector<4x128xi8>
      %23 = arith.andi %22, %19 : vector<4x128xi1>
      %c0_8 = arith.constant 0 : index
      %c0_9 = arith.constant 0 : index
      %24 = vector.load %arg2[%c0_8, %c0_9] : memref<4x128xf32, #tpu.memory_space<vmem>>, vector<4x128xf32>
      %c0_10 = arith.constant 0 : index
      %c0_11 = arith.constant 0 : index
      %25 = vector.load %arg3[%c0_10, %c0_11] : memref<4x128xf32, #tpu.memory_space<vmem>>, vector<4x128xf32>
      %cst = arith.constant 9.99999993E-9 : f32
      %26 = vector.broadcast %cst : f32 to vector<4x128xf32>
      %27 = arith.addf %24, %26 : vector<4x128xf32>
      %28 = math.log %27 : vector<4x128xf32>
      %cst_12 = arith.constant 9.99999993E-9 : f32
      %29 = vector.broadcast %cst_12 : f32 to vector<4x128xf32>
      %30 = arith.addf %25, %29 : vector<4x128xf32>
      %31 = math.log %30 : vector<4x128xf32>
      %32 = arith.subf %28, %31 : vector<4x128xf32>
      %cst_13 = arith.constant 0.000000e+00 : f32
      %33 = vector.broadcast %cst_13 : f32 to vector<4x128xf32>
      %34 = arith.select %23, %32, %33 : vector<4x128xi1>, vector<4x128xf32>
      %c0_14 = arith.constant 0 : index
      %c0_15 = arith.constant 0 : index
      %c0_16 = arith.constant 0 : index
      %35 = vector.load %arg5[%c0_14, %c0_15, %c0_16] : memref<1x1x128xf32, #tpu.memory_space<vmem>>, vector<1x1x128xf32>
      %36 = vector.shape_cast %35 : vector<1x1x128xf32> to vector<1x128xf32>
      %cst_17 = arith.constant dense<0.000000e+00> : vector<128xf32>
      %37 = vector.multi_reduction <add>, %34, %cst_17 [0] : vector<4x128xf32> to vector<128xf32>
      %38 = vector.shape_cast %37 : vector<128xf32> to vector<1x128xf32>
      %39 = arith.addf %36, %38 : vector<1x128xf32>
      %c0_18 = arith.constant 0 : index
      %c0_19 = arith.constant 0 : index
      %c0_20 = arith.constant 0 : index
      %40 = vector.load %arg5[%c0_18, %c0_19, %c0_20] : memref<1x1x128xf32, #tpu.memory_space<vmem>>, vector<1x1x128xf32>
      %41 = vector.shape_cast %40 : vector<1x1x128xf32> to vector<1x128xf32>
      %42 = vector.shape_cast %39 : vector<1x128xf32> to vector<1x1x128xf32>
      tpu.vector_store %arg5[%c0_18, %c0_19, %c0_20], %42 {strides = array<i32>} : memref<1x1x128xf32, #tpu.memory_space<vmem>>, vector<1x1x128xf32>,
      %c0_21 = arith.constant 0 : index
      %c0_22 = arith.constant 0 : index
      %c0_23 = arith.constant 0 : index
      %43 = vector.load %arg6[%c0_21, %c0_22, %c0_23] : memref<1x1x128xf32, #tpu.memory_space<vmem>>, vector<1x1x128xf32>
      %44 = vector.shape_cast %43 : vector<1x1x128xf32> to vector<1x128xf32>
      %45 = arith.mulf %34, %34 : vector<4x128xf32>
      %cst_24 = arith.constant dense<0.000000e+00> : vector<128xf32>
      %46 = vector.multi_reduction <add>, %45, %cst_24 [0] : vector<4x128xf32> to vector<128xf32>
      %47 = vector.shape_cast %46 : vector<128xf32> to vector<1x128xf32>
      %48 = arith.addf %44, %47 : vector<1x128xf32>
      %c0_25 = arith.constant 0 : index
      %c0_26 = arith.constant 0 : index
      %c0_27 = arith.constant 0 : index
      %49 = vector.load %arg6[%c0_25, %c0_26, %c0_27] : memref<1x1x128xf32, #tpu.memory_space<vmem>>, vector<1x1x128xf32>
      %50 = vector.shape_cast %49 : vector<1x1x128xf32> to vector<1x128xf32>
      %51 = vector.shape_cast %48 : vector<1x128xf32> to vector<1x1x128xf32>
      tpu.vector_store %arg6[%c0_25, %c0_26, %c0_27], %51 {strides = array<i32>} : memref<1x1x128xf32, #tpu.memory_space<vmem>>, vector<1x1x128xf32>,
      %c0_28 = arith.constant 0 : index
      %c0_29 = arith.constant 0 : index
      %c0_30 = arith.constant 0 : index
      %52 = vector.load %arg7[%c0_28, %c0_29, %c0_30] : memref<1x1x128xf32, #tpu.memory_space<vmem>>, vector<1x1x128xf32>
      %53 = vector.shape_cast %52 : vector<1x1x128xf32> to vector<1x128xf32>
      %54 = arith.extui %23 : vector<4x128xi1> to vector<4x128xi32>
      %55 = arith.sitofp %54 : vector<4x128xi32> to vector<4x128xf32>
      %cst_31 = arith.constant dense<0.000000e+00> : vector<128xf32>
      %56 = vector.multi_reduction <add>, %55, %cst_31 [0] : vector<4x128xf32> to vector<128xf32>
      %57 = vector.shape_cast %56 : vector<128xf32> to vector<1x128xf32>
      %58 = arith.addf %53, %57 : vector<1x128xf32>
      %c0_32 = arith.constant 0 : index
      %c0_33 = arith.constant 0 : index
      %c0_34 = arith.constant 0 : index
      %59 = vector.load %arg7[%c0_32, %c0_33, %c0_34] : memref<1x1x128xf32, #tpu.memory_space<vmem>>, vector<1x1x128xf32>
      %60 = vector.shape_cast %59 : vector<1x1x128xf32> to vector<1x128xf32>
      %61 = vector.shape_cast %58 : vector<1x128xf32> to vector<1x1x128xf32>
      tpu.vector_store %arg7[%c0_32, %c0_33, %c0_34], %61 {strides = array<i32>} : memref<1x1x128xf32, #tpu.memory_space<vmem>>, vector<1x1x128xf32>,
    } else {
    }
    return
  }
  func.func @transform_0(%arg0: i32, %arg1: i32) -> (i32, i32) {
    %c1_i32 = arith.constant 1 : i32
    %0 = arith.muli %arg0, %c1_i32 : i32
    %1 = arith.addi %0, %arg1 : i32
    %c0_i32 = arith.constant 0 : i32
    %2 = arith.minsi %1, %c0_i32 : i32
    %c0_i32_0 = arith.constant 0 : i32
    %c0_i32_1 = arith.constant 0 : i32
    return %2, %c0_i32_0 : i32, i32
  }
  func.func @transform_1(%arg0: i32, %arg1: i32) -> (i32, i32) {
    %c1_i32 = arith.constant 1 : i32
    %0 = arith.muli %arg0, %c1_i32 : i32
    %1 = arith.addi %0, %arg1 : i32
    %c0_i32 = arith.constant 0 : i32
    %2 = arith.minsi %1, %c0_i32 : i32
    %c0_i32_0 = arith.constant 0 : i32
    %c0_i32_1 = arith.constant 0 : i32
    return %2, %c0_i32_0 : i32, i32
  }
  func.func @transform_2(%arg0: i32, %arg1: i32) -> (i32, i32) {
    %c1_i32 = arith.constant 1 : i32
    %0 = arith.muli %arg0, %c1_i32 : i32
    %1 = arith.addi %0, %arg1 : i32
    %c0_i32 = arith.constant 0 : i32
    %2 = arith.minsi %1, %c0_i32 : i32
    %c0_i32_0 = arith.constant 0 : i32
    %c0_i32_1 = arith.constant 0 : i32
    return %2, %c0_i32_0 : i32, i32
  }
  func.func @transform_3(%arg0: i32, %arg1: i32) -> (i32, i32, i32) {
    %c0_i32 = arith.constant 0 : i32
    %c0_i32_0 = arith.constant 0 : i32
    %c0_i32_1 = arith.constant 0 : i32
    return %arg0, %c0_i32, %c0_i32_0 : i32, i32, i32
  }
  func.func @transform_4(%arg0: i32, %arg1: i32) -> (i32, i32, i32) {
    %c0_i32 = arith.constant 0 : i32
    %c0_i32_0 = arith.constant 0 : i32
    %c0_i32_1 = arith.constant 0 : i32
    return %arg0, %c0_i32, %c0_i32_0 : i32, i32, i32
  }
  func.func @transform_5(%arg0: i32, %arg1: i32) -> (i32, i32, i32) {
    %c0_i32 = arith.constant 0 : i32
    %c0_i32_0 = arith.constant 0 : i32
    %c0_i32_1 = arith.constant 0 : i32
    return %arg0, %c0_i32, %c0_i32_0 : i32, i32, i32
  }
}

</mosaic_0001>

<llo_original>
// kernel: tpu_custom_call.1
$region0: #{tpu_custom_call.1}
  #allocation0 [shape = 'u32[]', space=smem, size = 0x4, offset = 0x4, fixed_abs, tag = 'smem constant byte address 0x4 - core index']
  #allocation1 [shape = 'u32[144,128]{1,0:T(1,128)}', space=vmem, size = 0x12000, scoped, tag = 'internal scratch']
  %s0 = inlined_call_operand.hbm [shape: f32[4,128], index: 0, kind: input, shape index: {}]
  %s1 = inlined_call_operand.hbm [shape: f32[4,128], index: 1, kind: input, shape index: {}]
  %s2 = inlined_call_operand.vmem [shape: s8[4,128], index: 2, kind: input, shape index: {}]
  %s3 = inlined_call_operand.hbm [shape: f32[1,1,128], index: 3, kind: output, shape index: {0}]
  %s4 = inlined_call_operand.hbm [shape: f32[1,1,128], index: 4, kind: output, shape index: {1}]
  %s5 = inlined_call_operand.hbm [shape: f32[1,1,128], index: 5, kind: output, shape index: {2}]
  %6 = xla_tuple %s3, %s4, %s5
  %s7 = sld [smem:[#allocation0]]
  $region58: #{tpu_custom_call.1} parent=0
    _
  %s9 = ssub.s32 1, %s7
  %s10 = scalar_select 0, %s9, %s7
  $region1: #{tpu_custom_call.1} parent=0
    #allocation2 [shape = 'u8[2048]{0}', space=vmem, size = 0x800, scoped, tag = 'input window, operand 0, single buffered']
    #allocation3 [shape = 's32[1]{0}', space=sflag, size = 0x4, scoped, tag = 'scoped memory for tpu_custom_call.1']
    #allocation4 [shape = 's32[1]{0}', space=sflag, size = 0x4, scoped, tag = 'scoped memory for tpu_custom_call.1']
    #allocation5 [shape = 'u8[2048]{0}', space=vmem, size = 0x800, scoped, tag = 'input window, operand 1, single buffered']
    #allocation6 [shape = 's32[1]{0}', space=sflag, size = 0x4, scoped, tag = 'scoped memory for tpu_custom_call.1']
    #allocation7 [shape = 'u8[512]{0}', space=vmem, size = 0x400, scoped, tag = 'output window, operand 0, single buffered']
    #allocation8 [shape = 'u8[512]{0}', space=vmem, size = 0x400, scoped, tag = 'output window, operand 1, single buffered']
    #allocation9 [shape = 's32[1]{0}', space=sflag, size = 0x4, scoped, tag = 'scoped memory for tpu_custom_call.1']
    #allocation10 [shape = 'u8[512]{0}', space=vmem, size = 0x400, scoped, tag = 'output window, operand 2, single buffered']
    %11 = vsyncpa [#allocation3], 0
    %12 = vsyncpa [#allocation6], 0
    %13 = vsyncpa [#allocation4], 0
    %14 = vsyncpa [#allocation9], 0
    // Predicated region
    $region2: #{tpu_custom_call.1} parent=1 // pred_check
      _
    $region3: #{tpu_custom_call.1} parent=1 // pred_check_branch
      %16 = sbr.rel (0) target = $region5
    $region4: #{tpu_custom_call.1} parent=1 // pred_region
      %s17 = sadd.s32 0, 0
      %p18 = scmp.lt.s32.totalorder %s17, 0
      %s19 = scalar_select %p18, %s17, 0
      %s21 = ssub.s32 64, 64
      %22 = vsyncadd [#allocation3], %s21
      %s23 = smul.addr %s19, 64
      %s24 = scalar_lea.hbm %s0, %s23
      %s26 = sshll.u32 [#allocation2], 4
      %s27 = int_to_ptr.vmem [resolvable:$true] %s26
      %29 = dma.hbm_to_vmem [thread:$0]  %s24, 64, %s27, [#allocation3]
    $region5: #{tpu_custom_call.1} parent=1 // pred_fallthru
      _
    // Predicated region
    $region6: #{tpu_custom_call.1} parent=1 // pred_check
      _
    $region7: #{tpu_custom_call.1} parent=1 // pred_check_branch
      %31 = sbr.rel (0) target = $region9
    $region8: #{tpu_custom_call.1} parent=1 // pred_region
      %s32 = sadd.s32 0, 0
      %p33 = scmp.lt.s32.totalorder %s32, 0
      %s34 = scalar_select %p33, %s32, 0
      %s36 = ssub.s32 64, 64
      %37 = vsyncadd [#allocation6], %s36
      %s38 = smul.addr %s34, 64
      %s39 = scalar_lea.hbm %s1, %s38
      %s41 = sshll.u32 [#allocation5], 4
      %s42 = int_to_ptr.vmem [resolvable:$true] %s41
      %44 = dma.hbm_to_vmem [thread:$0]  %s39, 64, %s42, [#allocation6]
    $region9: #{tpu_custom_call.1} parent=1 // pred_fallthru
      _
    // Predicated region
    $region10: #{tpu_custom_call.1} parent=1 // pred_check
      _
    $region11: #{tpu_custom_call.1} parent=1 // pred_check_branch
      %46 = sbr.rel (0) target = $region13
    $region12: #{tpu_custom_call.1} parent=1 // pred_region
      %s47 = sadd.s32 0, 0
      %p48 = scmp.lt.s32.totalorder %s47, 0
      %s49 = scalar_select %p48, %s47, 0
      %p50 = scmp.lt.s32.totalorder %s49, 0
      %s51 = scalar_select %p50, %s49, 0
      %s52 = scalar_lea.vmem %s2, %s51
      %s53 = sadd.s32 0, 0
      %p54 = scmp.lt.s32.totalorder %s53, 0
      %s55 = scalar_select %p54, %s53, 0
    $region13: #{tpu_custom_call.1} parent=1 // pred_fallthru
      _
    // Predicated region
    $region14: #{tpu_custom_call.1} parent=1 // pred_check
      _
    $region15: #{tpu_custom_call.1} parent=1 // pred_check_branch
      %57 = sbr.rel (0) target = $region17
    $region16: #{tpu_custom_call.1} parent=1 // pred_region
      %58 = dma.done [#allocation3], 64
    $region17: #{tpu_custom_call.1} parent=1 // pred_fallthru
      _
    // Predicated region
    $region18: #{tpu_custom_call.1} parent=1 // pred_check
      _
    $region19: #{tpu_custom_call.1} parent=1 // pred_check_branch
      %60 = sbr.rel (0) target = $region21
    $region20: #{tpu_custom_call.1} parent=1 // pred_region
      %61 = dma.done [#allocation6], 64
    $region21: #{tpu_custom_call.1} parent=1 // pred_fallthru
      _
    %s62 = sadd.s32 0, 0
    %p63 = scmp.lt.s32.totalorder %s62, 0
    %s64 = scalar_select %p63, %s62, 0
    %p65 = scmp.lt.s32.totalorder %s64, 0
    %s66 = scalar_select %p65, %s64, 0
    %s67 = scalar_lea.vmem %s2, %s66
    %s68 = sadd.s32 0, 0
    %p69 = scmp.lt.s32.totalorder %s68, 0
    %s70 = scalar_select %p69, %s68, 0
    %s71 = sadd.s32 0, 0
    %p72 = scmp.lt.s32.totalorder %s71, 0
    %s73 = scalar_select %p72, %s71, 0
    %s74 = sadd.s32 0, 0
    %p75 = scmp.lt.s32.totalorder %s74, 0
    %s76 = scalar_select %p75, %s74, 0
    %p77 = scmp.lt.s32.totalorder %s76, 0
    %s78 = scalar_select %p77, %s76, 0
    %s79 = scalar_lea.vmem %s2, %s78
    %s80 = sadd.s32 0, 0
    %p81 = scmp.lt.s32.totalorder %s80, 0
    %s82 = scalar_select %p81, %s80, 0
    %p85 = scmp.eq.s32.totalorder 0, 0
    // Predicated region
    $region22: #{tpu_custom_call.1} parent=1 // pred_check
      %p86 = pneg %p85
    $region23: #{tpu_custom_call.1} parent=1 // pred_check_branch
      %88 = sbr.rel (%p86) target = $region25
    $region24: #{tpu_custom_call.1} parent=1 // pred_region
      %89 = vst [vmem:[#allocation7] sm:$0x1] 0.0
      %90 = vst [vmem:[#allocation8] sm:$0x1] 0.0
      %91 = vst [vmem:[#allocation10] sm:$0x1] 0.0
    $region25: #{tpu_custom_call.1} parent=1 // pred_fallthru
      _
    %s92 = sadd.s32 0, 0
    %s93 = smul.u32 %s92, 4
    %s94 = sadd.s32 %s93, 4
    %p95 = scmp.le.s32.totalorder %s94, 4
    %p96 = scmp.lt.s32.totalorder %s93, 4
    %p97 = scmp.gt.s32.totalorder %s94, 4
    %p98 = pnand %p96, %p97
    %p99 = pneg %p98
    // Predicated region
    $region26: #{tpu_custom_call.1} parent=1 // pred_check
      %p100 = pneg %p95
    $region27: #{tpu_custom_call.1} parent=1 // pred_check_branch
      %102 = sbr.rel (%p100) target = $region29
    $region28: #{tpu_custom_call.1} parent=1 // pred_region
      %v103 = vld [vmem:[%s79] sm:$0x1]
      %vm104 = vnez %v103
      %v105 = vld [vmem:[#allocation2] sm:$0xf]
      %v106 = vld [vmem:[#allocation5] sm:$0xf]
      %v107 = vadd.f32 %v105, 1e-08
      %v108 = vlog2.pop %v107
      %v109 = vmul.f32 %v108, 0.6931472
      %v110 = vadd.f32 %v106, 1e-08
      %v111 = vlog2.pop %v110
      %v112 = vmul.f32 %v111, 0.6931472
      %v113 = vsub.f32 %v109, %v112
      %v114 = vsel %vm104, 16843009, 0
      %v115 = vunpack.c.0.s8 %v114
      %vm116 = vcmp.ne.s32.totalorder %v115, 0
      %v117 = vsel %vm116, %v113, 0.0
      %v118 = vld [vmem:[#allocation7] sm:$0x1]
      %vm119 = vcmask 1043456
      %v120 = vsel %vm119, %v117, 0.0
      %v121 = vrot.slane %v120, 4
      %v122 = vadd.f32 %v120, %v121
      %v123 = vrot.slane %v122, 2
      %v124 = vadd.f32 %v122, %v123
      %v125 = vrot.slane %v124, 1
      %v126 = vadd.f32 %v124, %v125
      %v127 = vadd.f32 %v118, %v126
      %128 = vst [vmem:[#allocation7] sm:$0x1] %v127
      %v129 = vld [vmem:[#allocation8] sm:$0x1]
      %v130 = vmul.f32 %v117, %v117
      %v131 = vsel %vm119, %v130, 0.0
      %v132 = vrot.slane %v131, 4
      %v133 = vadd.f32 %v131, %v132
      %v134 = vrot.slane %v133, 2
      %v135 = vadd.f32 %v133, %v134
      %v136 = vrot.slane %v135, 1
      %v137 = vadd.f32 %v135, %v136
      %v138 = vadd.f32 %v129, %v137
      %139 = vst [vmem:[#allocation8] sm:$0x1] %v138
      %v140 = vld [vmem:[#allocation10] sm:$0x1]
      %v141 = vsel %vm116, 1, 0
      %v142 = vcvt.s32.f32 %v141
      %v143 = vsel %vm119, %v142, 0.0
      %v144 = vrot.slane %v143, 4
      %v145 = vadd.f32 %v143, %v144
      %v146 = vrot.slane %v145, 2
      %v147 = vadd.f32 %v145, %v146
      %v148 = vrot.slane %v147, 1
      %v149 = vadd.f32 %v147, %v148
      %v150 = vadd.f32 %v140, %v149
      %151 = vst [vmem:[#allocation10] sm:$0x1] %v150
    $region29: #{tpu_custom_call.1} parent=1 // pred_fallthru
      _
    // Predicated region
    $region30: #{tpu_custom_call.1} parent=1 // pred_check
      _
    $region31: #{tpu_custom_call.1} parent=1 // pred_check_branch
      %153 = sbr.rel (%p98) target = $region33
    $region32: #{tpu_custom_call.1} parent=1 // pred_region
      %v154 = vlaneseq
      %v155 = vshrl.u32 %v154, 7
      %v156 = vstv %s93
      %v157 = vadd.s32 %v156, %v155
      %vm158 = vcmp.lt.s32.totalorder %v157, 4
      %v159 = vld [vmem:[%s79] sm:$0x1]
      %vm160 = vnez %v159
      %v161 = vsel %vm158, 1, 0
      %v162 = vpack.c.b16 %v161, %v161
      %v163 = vpack.c.b8 %v162, %v162
      %vm164 = vnez %v163
      %vm165 = vmand %vm160, %vm164
      %v166 = vld [vmem:[#allocation2] sm:$0xf]
      %v167 = vld [vmem:[#allocation5] sm:$0xf]
      %v168 = vadd.f32 %v166, 1e-08
      %v169 = vlog2.pop %v168
      %v170 = vmul.f32 %v169, 0.6931472
      %v171 = vadd.f32 %v167, 1e-08
      %v172 = vlog2.pop %v171
      %v173 = vmul.f32 %v172, 0.6931472
      %v174 = vsub.f32 %v170, %v173
      %v175 = vsel %vm165, 16843009, 0
      %v176 = vunpack.c.0.s8 %v175
      %vm177 = vcmp.ne.s32.totalorder %v176, 0
      %v178 = vsel %vm177, %v174, 0.0
      %v179 = vld [vmem:[#allocation7] sm:$0x1]
      %vm180 = vcmask 1043456
      %v181 = vsel %vm180, %v178, 0.0
      %v182 = vrot.slane %v181, 4
      %v183 = vadd.f32 %v181, %v182
      %v184 = vrot.slane %v183, 2
      %v185 = vadd.f32 %v183, %v184
      %v186 = vrot.slane %v185, 1
      %v187 = vadd.f32 %v185, %v186
      %v188 = vadd.f32 %v179, %v187
      %189 = vst [vmem:[#allocation7] sm:$0x1] %v188
      %v190 = vld [vmem:[#allocation8] sm:$0x1]
      %v191 = vmul.f32 %v178, %v178
      %v192 = vsel %vm180, %v191, 0.0
      %v193 = vrot.slane %v192, 4
      %v194 = vadd.f32 %v192, %v193
      %v195 = vrot.slane %v194, 2
      %v196 = vadd.f32 %v194, %v195
      %v197 = vrot.slane %v196, 1
      %v198 = vadd.f32 %v196, %v197
      %v199 = vadd.f32 %v190, %v198
      %200 = vst [vmem:[#allocation8] sm:$0x1] %v199
      %v201 = vld [vmem:[#allocation10] sm:$0x1]
      %v202 = vsel %vm177, 1, 0
      %v203 = vcvt.s32.f32 %v202
      %v204 = vsel %vm180, %v203, 0.0
      %v205 = vrot.slane %v204, 4
      %v206 = vadd.f32 %v204, %v205
      %v207 = vrot.slane %v206, 2
      %v208 = vadd.f32 %v206, %v207
      %v209 = vrot.slane %v208, 1
      %v210 = vadd.f32 %v208, %v209
      %v211 = vadd.f32 %v201, %v210
      %212 = vst [vmem:[#allocation10] sm:$0x1] %v211
    $region33: #{tpu_custom_call.1} parent=1 // pred_fallthru
      _
    // Predicated region
    $region34: #{tpu_custom_call.1} parent=1 // pred_check
      _
    $region35: #{tpu_custom_call.1} parent=1 // pred_check_branch
      %214 = sbr.rel (0) target = $region37
    $region36: #{tpu_custom_call.1} parent=1 // pred_region
      %s216 = ssub.s32 16, 16
      %217 = vsyncadd [#allocation4], %s216
      %s219 = sshll.u32 [#allocation7], 4
      %s220 = int_to_ptr.vmem [resolvable:$true] %s219
      %222 = dma.vmem_to_hbm [thread:$0]  %s220, 16, %s3, [#allocation4]
    $region37: #{tpu_custom_call.1} parent=1 // pred_fallthru
      _
    // Predicated region
    $region38: #{tpu_custom_call.1} parent=1 // pred_check
      _
    $region39: #{tpu_custom_call.1} parent=1 // pred_check_branch
      %224 = sbr.rel (0) target = $region41
    $region40: #{tpu_custom_call.1} parent=1 // pred_region
      %s226 = ssub.s32 16, 16
      %227 = vsyncadd [#allocation9], %s226
      %s229 = sshll.u32 [#allocation8], 4
      %s230 = int_to_ptr.vmem [resolvable:$true] %s229
      %232 = dma.vmem_to_hbm [thread:$0]  %s230, 16, %s4, [#allocation9]
    $region41: #{tpu_custom_call.1} parent=1 // pred_fallthru
      _
    // Predicated region
    $region42: #{tpu_custom_call.1} parent=1 // pred_check
      _
    $region43: #{tpu_custom_call.1} parent=1 // pred_check_branch
      %234 = sbr.rel (0) target = $region45
    $region44: #{tpu_custom_call.1} parent=1 // pred_region
      %s236 = ssub.s32 16, 16
      %237 = vsyncadd [#allocation9], %s236
      %s239 = sshll.u32 [#allocation10], 4
      %s240 = int_to_ptr.vmem [resolvable:$true] %s239
      %242 = dma.vmem_to_hbm [thread:$0]  %s240, 16, %s5, [#allocation9]
    $region45: #{tpu_custom_call.1} parent=1 // pred_fallthru
      _
    // Predicated region
    $region46: #{tpu_custom_call.1} parent=1 // pred_check
      _
    $region47: #{tpu_custom_call.1} parent=1 // pred_check_branch
      %244 = sbr.rel (0) target = $region49
    $region48: #{tpu_custom_call.1} parent=1 // pred_region
      %245 = dma.done [#allocation4], 16
    $region49: #{tpu_custom_call.1} parent=1 // pred_fallthru
      _
    // Predicated region
    $region50: #{tpu_custom_call.1} parent=1 // pred_check
      _
    $region51: #{tpu_custom_call.1} parent=1 // pred_check_branch
      %247 = sbr.rel (0) target = $region53
    $region52: #{tpu_custom_call.1} parent=1 // pred_region
      %248 = dma.done [#allocation9], 16
    $region53: #{tpu_custom_call.1} parent=1 // pred_fallthru
      _
    // Predicated region
    $region54: #{tpu_custom_call.1} parent=1 // pred_check
      _
    $region55: #{tpu_custom_call.1} parent=1 // pred_check_branch
      %250 = sbr.rel (0) target = $region57
    $region56: #{tpu_custom_call.1} parent=1 // pred_region
      %251 = dma.done [#allocation9], 16
    $region57: #{tpu_custom_call.1} parent=1 // pred_fallthru
      _
    %252 = vsyncpa [#allocation3], 1
    %253 = vsyncpa [#allocation6], 1
    %254 = vsyncpa [#allocation4], 1
    %255 = vsyncpa [#allocation9], 1

</llo_original>
